<compile_context>
chip_gen: v5e
topology: v5e:2x2
jax: 0.10.0
libtpu: 0.0.40
codegen_flags: <defaults>
</compile_context>

<pallas_src>
import math

import jax
import jax.numpy as jnp
from jax.experimental import pallas as pl
from jax.experimental.pallas import tpu as pltpu


def _round_up(x, m):
    return ((x + m - 1) // m) * m


def _cdiv(a, b):
    return -(-a // b)


# --------------------------- TPU generation info -----------------------------
def _tpu_info():
    """Returns (vmem_capacity_bytes, mxu_align, tensorcores_per_chip)."""
    kind = ""
    try:
        dev = jax.devices()[0]
        if dev.platform == "tpu":
            kind = (dev.device_kind or "").lower()
    except Exception:
        pass
    vmem = None
    try:
        vmem = int(pltpu.get_tpu_info().vmem_capacity_bytes)
    except Exception:
        vmem = None
    if "v7" in kind or "7x" in kind:
        return (vmem or (64 << 20)), 256, 2      # 64 MiB VMEM/TC, 2x256^2 MXU, 2 TCs
    if "v6" in kind:
        return (vmem or (128 << 20)), 256, 1     # 128 MiB, 2x256^2 MXU
    if "v5" in kind:
        return (vmem or (128 << 20)), 128, 1     # 128 MiB, 4x128^2 MXU
    return (vmem or (64 << 20)), 128, 1          # unknown: conservative


def _balanced_tile(dim, max_tile, align):
    """Largest `align`-multiple tile <= max_tile that balances padding across
    ceil(dim / max_tile) tiles (caps padding at < align per tile)."""
    dim = max(int(dim), 1)
    max_tile = max(_round_up(int(max_tile), align), align)
    padded = _round_up(dim, align)
    if padded <= max_tile:
        return padded
    num = _cdiv(dim, max_tile)
    return _round_up(_cdiv(dim, num), align)


def _pick_align(dim, mxu_align):
    """Use the MXU-native granularity (256 on v6e/v7x) only when the dim is
    large enough that the extra padding is negligible; else the 128-lane min."""
    return mxu_align if dim >= 4 * mxu_align else 128


# ----------------------------- Pallas kernel --------------------------------
def _sparse_linear_kernel(x_ref, wt_ref, b_ref, o_ref, acc_ref):
    """Grid = (B tiles, N tiles, K tiles); K is the innermost reduction axis.

    x_ref : [tb, tk]   activations (bf16 by default)
    wt_ref: [tk, tn]   masked weight, pre-transposed (lane-dense along C_out)
    b_ref : [1, tn]    f32 bias row
    o_ref : [tb, tn]   output tile (resident across the K axis)
    acc_ref:[tb, tn]   f32 VMEM accumulator scratch
    """
    k = pl.program_id(2)

    @pl.when(k == 0)
    def _():
        # Seed the accumulator with the bias row: removes the bias add from
        # the K epilogue (which already carries the cast + store).
        acc_ref[...] = jnp.broadcast_to(b_ref[...], acc_ref.shape)

    acc_ref[...] += jnp.dot(x_ref[...], wt_ref[...],
                            preferred_element_type=jnp.float32)

    @pl.when(k == pl.num_programs(2) - 1)
    def _():
        o_ref[...] = acc_ref[...].astype(o_ref.dtype)


# ---------------------- one-time weight preprocessing ------------------------
def pack_sparse_linear(weight, mask, bias=None, *, tile_n=512, tile_k=1024,
                       compute_dtype=jnp.bfloat16):
    """One-time weight packing.  Call ONCE (at init / first forward) and reuse
    across forwards: folds the grid-invariant sparsity mask into the weight,
    transposes to a lane-dense [C_in, C_out] layout, casts to the compute
    dtype and zero-pads to tile multiples, so repeated forwards never re-run
    the transpose/pad as extra XLA HBM passes.

    Tuning hints:
      v6e : tile_n=512 (up to 1024), tile_k=1024   (defaults)
      v5e : tile_n=512..1024, tile_k=512..1024     (128-granular MXU)
      v7x : defaults; the forward caps VMEM at ~48 MiB and splits tiles so
            both TensorCores get work.
    """
    C_out, C_in = weight.shape
    _, mxu_align, _ = _tpu_info()

    tn = _balanced_tile(C_out, tile_n, _pick_align(C_out, mxu_align))
    tk = _balanced_tile(C_in, tile_k, _pick_align(C_in, mxu_align))
    Np = _round_up(C_out, tn)
    Kp = _round_up(C_in, tk)

    w_t = (weight * mask.astype(weight.dtype)).T.astype(compute_dtype)
    if (Kp, Np) != (C_in, C_out):
        w_t = jnp.pad(w_t, ((0, Kp - C_in), (0, Np - C_out)))

    if bias is None:
        bias2d = jnp.zeros((1, Np), jnp.float32)
    else:
        bias2d = bias.astype(jnp.float32).reshape(1, C_out)
        if Np != C_out:
            bias2d = jnp.pad(bias2d, ((0, 0), (0, Np - C_out)))

    # TODO(synk): for block-structured masks, build a per-(k, j) nonzero-block
    # table here and scalar-prefetch it so the forward can skip all-zero
    # (tk, tn) weight blocks (DMA + MXU); no benefit for unstructured masks.
    # TODO(synk): int8 (v5e/v6e) / fp8-e4m3 (v7x) weight quantization with an
    # epilogue scale would halve weight HBM traffic for small-batch shapes.
    return dict(w_t=w_t, bias2d=bias2d, tn=tn, tk=tk,
                C_in=C_in, C_out=C_out, compute_dtype=compute_dtype)


# --------------------------------- forward -----------------------------------
def sparse_linear_packed(x, packed, *, tile_b=512):
    """Forward pass with a weight packed by pack_sparse_linear().

    x: [B, C_in]  ->  [B, C_out] in x.dtype.
    """
    B, C_in = x.shape
    assert C_in == packed["C_in"], "x feature dim mismatch with packed weight"
    w_t, bias2d = packed["w_t"], packed["bias2d"]
    tn, tk = packed["tn"], packed["tk"]
    compute_dtype = packed["compute_dtype"]
    Kp, Np = w_t.shape
    C_out = packed["C_out"]
    out_dtype = x.dtype

    vmem_bytes, _, n_cores = _tpu_info()
    vmem_cap = (vmem_bytes * 3) // 4       # headroom for compiler-internal scratch

    in_bytes = jnp.dtype(compute_dtype).itemsize
    out_bytes = jnp.dtype(out_dtype).itemsize

    # Batch tile: 16-row granularity for 16-bit compute dtypes (full sublane
    # packing), 8 otherwise; balanced so padding is at most one unit.
    align_b = 16 if in_bytes == 2 else 8
    tb = _balanced_tile(B, tile_b, align_b)
    Bp = _round_up(B, tb)

    # v7x megacore: guarantee >= 2 blocks along a "parallel" grid axis so the
    # second TensorCore is not idle for small problems.
    if n_cores >= 2 and (Bp // tb) * (Np // tn) < 2:
        if tn >= 256 and (tn // 2) % 128 == 0:
            tn //= 2
        elif tb >= 2 * align_b:
            tb //= 2

    def _footprint(tb_, tn_, tk_, wbuf_):
        return (2 * tb_ * tk_ * in_bytes          # x (double-buffered)
                + wbuf_ * tk_ * tn_ * in_bytes    # masked W^T
                + 2 * tb_ * tn_ * out_bytes       # output
                + 2 * tn_ * 4                     # bias row
                + tb_ * tn_ * 4)                  # f32 accumulator scratch

    # Safety: shrink tiles if a user-supplied config (e.g. huge tiles with
    # f32 compute) would blow the per-generation VMEM budget.  Halving keeps
    # divisibility into the padded (Bp, Np, Kp) extents.
    while _footprint(tb, tn, tk, 2) > vmem_cap:
        if tk >= 256 and (tk // 2) % 128 == 0:
            tk //= 2
        elif tn >= 256 and (tn // 2) % 128 == 0:
            tn //= 2
        elif tb >= 2 * align_b:
            tb //= 2
        else:
            break

    xc = x.astype(compute_dtype)
    if (Bp, Kp) != (B, C_in):
        xc = jnp.pad(xc, ((0, Bp - B), (0, Kp - C_in)))

    grid = (Bp // tb, Np // tn, Kp // tk)

    # Small-batch / deep-K regime: the weight DMA is the only big HBM stream;
    # deepen its pipeline to hide latency spikes (VMEM headroom permitting).
    w_buffers = 2
    if grid[0] == 1 and grid[2] >= 3 and _footprint(tb, tn, tk, 3) <= vmem_cap:
        w_buffers = 3
    if w_buffers > 2:
        w_spec = pl.BlockSpec((tk, tn), lambda i, j, k: (k, j),
                              pipeline_mode=pl.Buffered(w_buffers))
    else:
        w_spec = pl.BlockSpec((tk, tn), lambda i, j, k: (k, j))

    vmem_limit = int(min(max(2 * _footprint(tb, tn, tk, w_buffers), 16 << 20),
                         vmem_cap))

    out = pl.pallas_call(
        _sparse_linear_kernel,
        out_shape=jax.ShapeDtypeStruct((Bp, Np), out_dtype),
        grid_spec=pltpu.PrefetchScalarGridSpec(
            num_scalar_prefetch=0,
            grid=grid,
            in_specs=[
                pl.BlockSpec((tb, tk), lambda i, j, k: (i, k)),   # x tile
                w_spec,                                           # masked W^T tile
                pl.BlockSpec((1, tn), lambda i, j, k: (0, j)),    # bias row
            ],
            out_specs=pl.BlockSpec((tb, tn), lambda i, j, k: (i, j)),
            scratch_shapes=[pltpu.VMEM((tb, tn), jnp.float32)],
        ),
        compiler_params=pltpu.CompilerParams(
            dimension_semantics=("parallel", "parallel", "arbitrary"),
            vmem_limit_bytes=vmem_limit,
        ),
    )(xc, w_t, bias2d)

    if (Bp, Np) != (B, C_out):
        out = out[:B, :C_out]
    return out


def sparse_linear(x, weight, mask, bias=None, *, tile_b=512, tile_n=512,
                  tile_k=1024, compute_dtype=jnp.bfloat16):
    """Convenience one-shot API: packs the weight, then runs the forward.
    For repeated forwards, call pack_sparse_linear() ONCE and reuse the result
    with sparse_linear_packed() — the packing is an extra HBM pass over W."""
    packed = pack_sparse_linear(weight, mask, bias, tile_n=tile_n,
                                tile_k=tile_k, compute_dtype=compute_dtype)
    return sparse_linear_packed(x, packed, tile_b=tile_b)


# ----------------------- deterministic parameter init -----------------------
def init_sparse_linear_params(key, in_channels, out_channels, sparse_mask):
    """Mirror the PyTorch __init__: per-output-row uniform init with
    fan_in = sparse_mask[row].sum(); values outside the mask are irrelevant
    (they are zeroed by the mask fold in the forward pass)."""
    k_w, k_b = jax.random.split(key)
    fan_in = jnp.maximum(sparse_mask.sum(axis=1), 1.0)            # [C_out]
    gain = math.sqrt(2.0 / (1.0 + 5.0))                           # leaky_relu, a=sqrt(5)
    std = gain / jnp.sqrt(fan_in)                                 # [C_out]
    w_bound = math.sqrt(3.0) * std                                # [C_out]
    u_w = jax.random.uniform(k_w, (out_channels, in_channels),
                             minval=-1.0, maxval=1.0)
    weight = u_w * w_bound[:, None]                               # row-wise bound
    b_bound = 1.0 / jnp.sqrt(fan_in)
    u_b = jax.random.uniform(k_b, (out_channels,), minval=-1.0, maxval=1.0)
    bias = u_b * b_bound
    return weight.astype(jnp.float32), bias.astype(jnp.float32)


# ---------------------------------- main -------------------------------------
if __name__ == "__main__":
    key = jax.random.PRNGKey(0)
    k_mask, k_x, k_params, k_mask2, k_x2, k_params2 = jax.random.split(key, 6)

    # ------------------- test 1: tiny shape, f32 + bf16 ----------------------
    batch, in_channels, out_channels = 8, 32, 16
    mask = (jax.random.uniform(k_mask, (out_channels, in_channels)) < 0.5)
    mask = mask.at[:, 0].set(True).astype(jnp.float32)   # >=1 nnz per row
    weight, bias = init_sparse_linear_params(k_params, in_channels,
                                             out_channels, mask)
    x = jax.random.normal(k_x, (batch, in_channels), dtype=jnp.float32)
    w_masked = weight * mask

    out_f32 = jax.block_until_ready(
        sparse_linear(x, weight, mask, bias, compute_dtype=jnp.float32))
    ref_f32 = x @ w_masked.T + bias[None, :]
    assert out_f32.shape == (batch, out_channels)
    assert jnp.allclose(out_f32, ref_f32, atol=1e-5, rtol=1e-5), \
        "f32 kernel mismatch vs reference"

    out_bf16 = jax.block_until_ready(sparse_linear(x, weight, mask, bias))
    xb = x.astype(jnp.bfloat16).astype(jnp.float32)
    wb = w_masked.astype(jnp.bfloat16).astype(jnp.float32)
    ref_bf16 = xb @ wb.T + bias[None, :]
    assert out_bf16.shape == (batch, out_channels)
    assert jnp.allclose(out_bf16, ref_bf16, atol=1e-3, rtol=1e-3), \
        "bf16 kernel mismatch vs bf16-rounded reference"

    # -------- test 2: multi-K-tile shape, packed-weight (cached) path --------
    # tile_k=256 forces a 3-step K reduction: exercises the f32 accumulator,
    # bias-seeded init, K epilogue and the Buffered(3) weight stream.
    batch2, in2, out2 = 32, 768, 256
    mask2 = (jax.random.uniform(k_mask2, (out2, in2)) < 0.5)
    mask2 = mask2.at[:, 0].set(True).astype(jnp.float32)
    weight2, bias2 = init_sparse_linear_params(k_params2, in2, out2, mask2)
    x2 = jax.random.normal(k_x2, (batch2, in2), dtype=jnp.float32)

    packed2 = pack_sparse_linear(weight2, mask2, bias2, tile_k=256)
    out2_a = jax.block_until_ready(sparse_linear_packed(x2, packed2))
    out2_b = jax.block_until_ready(sparse_linear_packed(x2, packed2))  # reuse pack
    xb2 = x2.astype(jnp.bfloat16).astype(jnp.float32)
    wb2 = (weight2 * mask2).astype(jnp.bfloat16).astype(jnp.float32)
    ref2 = xb2 @ wb2.T + bias2[None, :]
    assert out2_a.shape == (batch2, out2)
    assert jnp.allclose(out2_a, ref2, atol=2e-2, rtol=2e-2), \
        "bf16 kernel mismatch vs bf16-rounded reference (multi-K)"
    assert jnp.allclose(out2_a, out2_b), "packed-weight reuse mismatch"

    print("KERNEL_OK")
</pallas_src>

<mosaic_0001>
module attributes {stable_mosaic.version = 11 : i64} {
  func.func @_sparse_linear_kernel(%arg0: i32, %arg1: i32, %arg2: i32, %arg3: memref<8x128xf32, #tpu.memory_space<vmem>>, %arg4: memref<128x128xf32, #tpu.memory_space<vmem>>, %arg5: memref<1x128xf32, #tpu.memory_space<vmem>>, %arg6: memref<8x128xf32, #tpu.memory_space<vmem>>, %arg7: memref<8x128xf32, #tpu.memory_space<vmem>>) attributes {dimension_semantics = [#tpu.dimension_semantics<parallel>, #tpu.dimension_semantics<parallel>, #tpu.dimension_semantics<arbitrary>], iteration_bounds = array<i64: 1, 1, 1>, scalar_prefetch = 0 : i64, scratch_operands = 1 : i64, tpu.core_type = #tpu.core_type<tc>, window_params = [{transform_indices = @transform_0, window_bounds = array<i64: 8, 128>}, {transform_indices = @transform_1, window_bounds = array<i64: 128, 128>}, {transform_indices = @transform_2, window_bounds = array<i64: 1, 128>}, {transform_indices = @transform_3, window_bounds = array<i64: 8, 128>}]} {
    %c0_i32 = arith.constant 0 : i32
    %0 = arith.cmpi eq, %arg2, %c0_i32 : i32
    %1 = arith.extui %0 : i1 to i32
    %c0_i32_0 = arith.constant 0 : i32
    %2 = arith.cmpi ne, %1, %c0_i32_0 : i32
    scf.if %2 {
      %c0_10 = arith.constant 0 : index
      %c0_11 = arith.constant 0 : index
      %12 = vector.load %arg5[%c0_10, %c0_11] : memref<1x128xf32, #tpu.memory_space<vmem>>, vector<1x128xf32>
      %13 = vector.shape_cast %12 : vector<1x128xf32> to vector<1x128xf32>
      %14 = vector.broadcast %13 : vector<1x128xf32> to vector<8x128xf32>
      %c0_12 = arith.constant 0 : index
      %c0_13 = arith.constant 0 : index
      %15 = vector.load %arg7[%c0_12, %c0_13] : memref<8x128xf32, #tpu.memory_space<vmem>>, vector<8x128xf32>
      tpu.vector_store %arg7[%c0_12, %c0_13], %14 {strides = array<i32>} : memref<8x128xf32, #tpu.memory_space<vmem>>, vector<8x128xf32>,
    } else {
    }
    %c0 = arith.constant 0 : index
    %c0_1 = arith.constant 0 : index
    %3 = vector.load %arg7[%c0, %c0_1] : memref<8x128xf32, #tpu.memory_space<vmem>>, vector<8x128xf32>
    %c0_2 = arith.constant 0 : index
    %c0_3 = arith.constant 0 : index
    %4 = vector.load %arg3[%c0_2, %c0_3] : memref<8x128xf32, #tpu.memory_space<vmem>>, vector<8x128xf32>
    %c0_4 = arith.constant 0 : index
    %c0_5 = arith.constant 0 : index
    %5 = vector.load %arg4[%c0_4, %c0_5] : memref<128x128xf32, #tpu.memory_space<vmem>>, vector<128x128xf32>
    %cst = arith.constant dense<0.000000e+00> : vector<8x128xf32>
    %6 = tpu.matmul %4, %5, %cst {dimension_numbers = #tpu.dot_dimension_numbers<[1], [0], [0], [1], [0, 0, 1, 1], [], []>} : vector<8x128xf32>, vector<128x128xf32>, vector<8x128xf32> -> vector<8x128xf32>
    %7 = arith.addf %3, %6 : vector<8x128xf32>
    %c0_6 = arith.constant 0 : index
    %c0_7 = arith.constant 0 : index
    %8 = vector.load %arg7[%c0_6, %c0_7] : memref<8x128xf32, #tpu.memory_space<vmem>>, vector<8x128xf32>
    tpu.vector_store %arg7[%c0_6, %c0_7], %7 {strides = array<i32>} : memref<8x128xf32, #tpu.memory_space<vmem>>, vector<8x128xf32>,
    %c0_i32_8 = arith.constant 0 : i32
    %9 = arith.cmpi eq, %arg2, %c0_i32_8 : i32
    %10 = arith.extui %9 : i1 to i32
    %c0_i32_9 = arith.constant 0 : i32
    %11 = arith.cmpi ne, %10, %c0_i32_9 : i32
    scf.if %11 {
      %c0_10 = arith.constant 0 : index
      %c0_11 = arith.constant 0 : index
      %12 = vector.load %arg7[%c0_10, %c0_11] : memref<8x128xf32, #tpu.memory_space<vmem>>, vector<8x128xf32>
      %c0_12 = arith.constant 0 : index
      %c0_13 = arith.constant 0 : index
      %13 = vector.load %arg6[%c0_12, %c0_13] : memref<8x128xf32, #tpu.memory_space<vmem>>, vector<8x128xf32>
      tpu.vector_store %arg6[%c0_12, %c0_13], %12 {strides = array<i32>} : memref<8x128xf32, #tpu.memory_space<vmem>>, vector<8x128xf32>,
    } else {
    }
    return
  }
  func.func @transform_0(%arg0: i32, %arg1: i32, %arg2: i32) -> (i32, i32) {
    %c0_i32 = arith.constant 0 : i32
    return %arg0, %arg2 : i32, i32
  }
  func.func @transform_1(%arg0: i32, %arg1: i32, %arg2: i32) -> (i32, i32) {
    %c0_i32 = arith.constant 0 : i32
    return %arg2, %arg1 : i32, i32
  }
  func.func @transform_2(%arg0: i32, %arg1: i32, %arg2: i32) -> (i32, i32) {
    %c0_i32 = arith.constant 0 : i32
    %c0_i32_0 = arith.constant 0 : i32
    return %c0_i32, %arg1 : i32, i32
  }
  func.func @transform_3(%arg0: i32, %arg1: i32, %arg2: i32) -> (i32, i32) {
    %c0_i32 = arith.constant 0 : i32
    return %arg0, %arg1 : i32, i32
  }
}

</mosaic_0001>

<llo_original>
// kernel: tpu_custom_call.1
$region0: #{tpu_custom_call.1}
  #allocation0 [shape = 'u32[]', space=smem, size = 0x4, offset = 0x4, fixed_abs, tag = 'smem constant byte address 0x4 - core index']
  #allocation1 [shape = 'u32[72,128]{1,0:T(1,128)}', space=vmem, size = 0x9000, scoped, tag = 'internal scratch']
  #allocation2 [shape = 'f32[8,128]{1,0:T(8,128)}', space=vmem, size = 0x1000, scoped, tag = 'scratch operand']
  %s0 = inlined_call_operand.hbm [shape: f32[8,128], index: 0, kind: input, shape index: {}]
  %s1 = inlined_call_operand.hbm [shape: f32[128,128], index: 1, kind: input, shape index: {}]
  %s2 = inlined_call_operand.vmem [shape: f32[1,128], index: 2, kind: input, shape index: {}]
  %s3 = inlined_call_operand.hbm [shape: f32[8,128], index: 3, kind: output, shape index: {}]
  %s4 = sld [smem:[#allocation0]]
  $region38: #{tpu_custom_call.1} parent=0
    _
  %s6 = ssub.s32 1, %s4
  %s7 = scalar_select 0, %s6, %s4
  $region1: #{tpu_custom_call.1} parent=0
    #allocation3 [shape = 'u8[4096]{0}', space=vmem, size = 0x1000, scoped, tag = 'input window, operand 0, single buffered']
    #allocation4 [shape = 's32[1]{0}', space=sflag, size = 0x4, scoped, tag = 'scoped memory for tpu_custom_call.1']
    #allocation5 [shape = 's32[1]{0}', space=sflag, size = 0x4, scoped, tag = 'scoped memory for tpu_custom_call.1']
    #allocation6 [shape = 'u8[65536]{0}', space=vmem, size = 0x10000, scoped, tag = 'input window, operand 1, single buffered']
    #allocation7 [shape = 's32[1]{0}', space=sflag, size = 0x4, scoped, tag = 'scoped memory for tpu_custom_call.1']
    #allocation8 [shape = 'u8[4096]{0}', space=vmem, size = 0x1000, scoped, tag = 'output window, operand 0, single buffered']
    %8 = vsyncpa [#allocation4], 0
    %9 = vsyncpa [#allocation7], 0
    %10 = vsyncpa [#allocation5], 0
    // Predicated region
    $region2: #{tpu_custom_call.1} parent=1 // pred_check
      _
    $region3: #{tpu_custom_call.1} parent=1 // pred_check_branch
      %12 = sbr.rel (0) target = $region5
    $region4: #{tpu_custom_call.1} parent=1 // pred_region
      %14 = vsyncadd [#allocation4], 0
      %s16 = sshll.u32 %s0, 4
      %s17 = int_to_ptr.hbm [resolvable:$true] %s16
      %s18 = sshll.u32 [#allocation3], 4
      %s19 = int_to_ptr.vmem [resolvable:$true] %s18
      %21 = dma.hbm_to_vmem [thread:$0]  %s17, 128, %s19, [#allocation4]
    $region5: #{tpu_custom_call.1} parent=1 // pred_fallthru
      _
    // Predicated region
    $region6: #{tpu_custom_call.1} parent=1 // pred_check
      _
    $region7: #{tpu_custom_call.1} parent=1 // pred_check_branch
      %23 = sbr.rel (0) target = $region9
    $region8: #{tpu_custom_call.1} parent=1 // pred_region
      %25 = vsyncadd [#allocation7], 0
      %s26 = sshll.u32 %s1, 4
      %s27 = int_to_ptr.hbm [resolvable:$true] %s26
      %s28 = sshll.u32 [#allocation6], 4
      %s29 = int_to_ptr.vmem [resolvable:$true] %s28
      %34 = dma.hbm_to_vmem [thread:$0]  %s27, 2048, %s29, [#allocation7], 128, 128, 8
    $region9: #{tpu_custom_call.1} parent=1 // pred_fallthru
      _
    // Predicated region
    $region10: #{tpu_custom_call.1} parent=1 // pred_check
      _
    $region11: #{tpu_custom_call.1} parent=1 // pred_check_branch
      %36 = sbr.rel (0) target = $region13
    $region12: #{tpu_custom_call.1} parent=1 // pred_region
      _
    $region13: #{tpu_custom_call.1} parent=1 // pred_fallthru
      _
    // Predicated region
    $region14: #{tpu_custom_call.1} parent=1 // pred_check
      _
    $region15: #{tpu_custom_call.1} parent=1 // pred_check_branch
      %38 = sbr.rel (0) target = $region17
    $region16: #{tpu_custom_call.1} parent=1 // pred_region
      %40 = dma.done [#allocation4], 128
    $region17: #{tpu_custom_call.1} parent=1 // pred_fallthru
      _
    // Predicated region
    $region18: #{tpu_custom_call.1} parent=1 // pred_check
      _
    $region19: #{tpu_custom_call.1} parent=1 // pred_check_branch
      %42 = sbr.rel (0) target = $region21
    $region20: #{tpu_custom_call.1} parent=1 // pred_region
      %44 = dma.done [#allocation7], 2048
    $region21: #{tpu_custom_call.1} parent=1 // pred_fallthru
      _
    %p45 = scmp.eq.s32.totalorder 0, 0
    // Predicated region
    $region22: #{tpu_custom_call.1} parent=1 // pred_check
      %p46 = pneg %p45
    $region23: #{tpu_custom_call.1} parent=1 // pred_check_branch
      %48 = sbr.rel (%p46) target = $region25
    $region24: #{tpu_custom_call.1} parent=1 // pred_region
      %v49 = vld [vmem:[%s2] sm:$0x1]
      %v51 = vperm.slane %v49, 0
      %53 = vst [vmem:[#allocation2] sm:$0xff] %v51
    $region25: #{tpu_custom_call.1} parent=1 // pred_fallthru
      _
    %v54 = vld [vmem:[#allocation2] sm:$0xff]
    %v55 = vld [vmem:[#allocation3] sm:$0xff]
    %v56 = vld [vmem:[#allocation6] sm:$0xff]
    %v57 = vld [vmem:[#allocation6 + $0x8] sm:$0xff]
    %v58 = vld [vmem:[#allocation6 + $0x10] sm:$0xff]
    %v59 = vld [vmem:[#allocation6 + $0x18] sm:$0xff]
    %v60 = vld [vmem:[#allocation6 + $0x20] sm:$0xff]
    %v61 = vld [vmem:[#allocation6 + $0x28] sm:$0xff]
    %v62 = vld [vmem:[#allocation6 + $0x30] sm:$0xff]
    %v63 = vld [vmem:[#allocation6 + $0x38] sm:$0xff]
    %v64 = vld [vmem:[#allocation6 + $0x40] sm:$0xff]
    %v65 = vld [vmem:[#allocation6 + $0x48] sm:$0xff]
    %v66 = vld [vmem:[#allocation6 + $0x50] sm:$0xff]
    %v67 = vld [vmem:[#allocation6 + $0x58] sm:$0xff]
    %v68 = vld [vmem:[#allocation6 + $0x60] sm:$0xff]
    %v69 = vld [vmem:[#allocation6 + $0x68] sm:$0xff]
    %v70 = vld [vmem:[#allocation6 + $0x70] sm:$0xff]
    %v71 = vld [vmem:[#allocation6 + $0x78] sm:$0xff]
    %72 = vmatpush.msra.mxu0 %v71
    %73 = vmatpush.msra.mxu0 %v70
    %74 = vmatpush.msra.mxu0 %v69
    %75 = vmatpush.msra.mxu0 %v68
    %76 = vmatpush.msra.mxu0 %v67
    %77 = vmatpush.msra.mxu0 %v66
    %78 = vmatpush.msra.mxu0 %v65
    %79 = vmatpush.msra.mxu0 %v64
    %80 = vmatpush.msra.mxu0 %v63
    %81 = vmatpush.msra.mxu0 %v62
    %82 = vmatpush.msra.mxu0 %v61
    %83 = vmatpush.msra.mxu0 %v60
    %84 = vmatpush.msra.mxu0 %v59
    %85 = vmatpush.msra.mxu0 %v58
    %86 = vmatpush.msra.mxu0 %v57
    %87 = vmatpush.msra.mxu0 %v56
    %88 = vmatmul.f32.gmra.mxu0 %v55
    %v89 = vpop.f32.mrf.mxu0
    %v90 = vadd.f32 0.0, %v89
    %91 = vdwg.mxu0
    %v92 = vadd.f32 %v54, %v90
    %93 = vst [vmem:[#allocation2] sm:$0xff] %v92
    // Predicated region
    $region26: #{tpu_custom_call.1} parent=1 // pred_check
      %p94 = pneg %p45
    $region27: #{tpu_custom_call.1} parent=1 // pred_check_branch
      %96 = sbr.rel (%p94) target = $region29
    $region28: #{tpu_custom_call.1} parent=1 // pred_region
      %v97 = vld [vmem:[#allocation2] sm:$0xff]
      %98 = vst [vmem:[#allocation8] sm:$0xff] %v97
    $region29: #{tpu_custom_call.1} parent=1 // pred_fallthru
      _
    // Predicated region
    $region30: #{tpu_custom_call.1} parent=1 // pred_check
      _
    $region31: #{tpu_custom_call.1} parent=1 // pred_check_branch
      %100 = sbr.rel (0) target = $region33
    $region32: #{tpu_custom_call.1} parent=1 // pred_region
      %102 = vsyncadd [#allocation5], 0
      %s104 = sshll.u32 [#allocation8], 4
      %s105 = int_to_ptr.vmem [resolvable:$true] %s104
      %s106 = sshll.u32 %s3, 4
      %s107 = int_to_ptr.hbm [resolvable:$true] %s106
      %109 = dma.vmem_to_hbm [thread:$0]  %s105, 128, %s107, [#allocation5]
    $region33: #{tpu_custom_call.1} parent=1 // pred_fallthru
      _
    // Predicated region
    $region34: #{tpu_custom_call.1} parent=1 // pred_check
      _
    $region35: #{tpu_custom_call.1} parent=1 // pred_check_branch
      %111 = sbr.rel (0) target = $region37
    $region36: #{tpu_custom_call.1} parent=1 // pred_region
      %113 = dma.done [#allocation5], 128
    $region37: #{tpu_custom_call.1} parent=1 // pred_fallthru
      _
    %114 = vsyncpa [#allocation4], 1
    %115 = vsyncpa [#allocation7], 1
    %116 = vsyncpa [#allocation5], 1

</llo_original>
